<compile_context>
chip_gen: v5e
topology: v5e:2x2
jax: 0.10.0
libtpu: 0.0.40
codegen_flags: <defaults>
</compile_context>

<pallas_src>
import functools
from collections import namedtuple

import numpy as np
import jax
import jax.numpy as jnp
from jax import lax
from jax.experimental import pallas as pl
from jax.experimental.pallas import tpu as pltpu


class PersistenceInformation(namedtuple('PersistenceInformation',
                                        ['pairing', 'diagram', 'dimension'],
                                        defaults=[None])):
    __slots__ = ()
    __iter__ = None


# ----------------------------- helpers -----------------------------

def _round_up(x, m):
    return ((x + m - 1) // m) * m


def _pick_tile(cap):
    """Largest 8 * 2**k that is <= cap (min 8)."""
    ti = 8
    while ti * 2 <= cap:
        ti *= 2
    return ti


# ----------------------------- Pallas kernel -----------------------------

def _argmax_kernel(x_ref, amax_ref, *, sign):
    """Fused (superlevel) negation + first-occurrence flat argmax per image.

    x_ref:    (TI, HW) float block — HW is the full image extent (not tiled)
    amax_ref: (TI, 128) int32 — argmax broadcast across lanes (unmasked store)
    """
    x = x_ref[...].astype(jnp.float32)
    if sign != 1.0:                       # superlevel: negate on the fly
        x = x * jnp.float32(sign)
    ti, hw = x.shape
    mx = jnp.max(x, axis=1, keepdims=True)                    # XLU reduce
    idx = lax.broadcasted_iota(jnp.int32, (ti, hw), 1)
    cand = jnp.where(x == mx, idx, jnp.int32(hw))
    amax = jnp.min(cand, axis=1, keepdims=True)               # (TI, 1)
    amax_ref[...] = jnp.broadcast_to(amax, amax_ref.shape)


def image_argmax(flat, *, sign, ti, vmem_limit_bytes):
    """Per-row flat argmax of sign*flat.  flat: (n_pad, HW), n_pad % ti == 0."""
    n_pad, hw = flat.shape
    return pl.pallas_call(
        functools.partial(_argmax_kernel, sign=sign),
        out_shape=jax.ShapeDtypeStruct((n_pad, 128), jnp.int32),
        grid=(n_pad // ti,),
        in_specs=[pl.BlockSpec((ti, hw), lambda i: (i, 0))],
        out_specs=pl.BlockSpec((ti, 128), lambda i: (i, 0)),
        compiler_params=pltpu.CompilerParams(
            dimension_semantics=("parallel",),
            vmem_limit_bytes=vmem_limit_bytes),
    )(flat)


# ------------------- host-side persistence pairing (NumPy) -------------------

def _zero_dim_pairs_numpy(img):
    """Union-find 0-dim sublevel-set persistence pairing (8-connectivity)."""
    H, W = img.shape
    flat = img.ravel()
    n = flat.size
    order = np.argsort(flat, kind='stable')
    parent = np.full(n, -1, dtype=np.int64)
    birth = np.arange(n, dtype=np.int64)
    added = np.zeros(n, dtype=bool)

    def find(i):
        root = i
        while parent[root] != root:
            root = parent[root]
        while parent[i] != root:
            parent[i], i = root, parent[i]
        return root

    finite_pairs = []
    neigh = ((-1, -1), (-1, 0), (-1, 1), (0, -1), (0, 1), (1, -1), (1, 0), (1, 1))
    for idx in order:
        idx = int(idx)
        parent[idx] = idx
        added[idx] = True
        r, c = divmod(idx, W)
        for dr, dc in neigh:
            nr, nc = r + dr, c + dc
            if 0 <= nr < H and 0 <= nc < W:
                nidx = nr * W + nc
                if added[nidx]:
                    ra, rb = find(idx), find(nidx)
                    if ra == rb:
                        continue
                    ba, bb = int(birth[ra]), int(birth[rb])
                    if (flat[ba], ba) <= (flat[bb], bb):
                        young_birth = bb
                        parent[rb] = ra
                    else:
                        young_birth = ba
                        parent[ra] = rb
                    if flat[idx] > flat[young_birth]:  # gudhi drops 0-persistence pairs
                        finite_pairs.append((young_birth, idx))
    essential_birth = int(order[0])  # global minimum (first occurrence)
    return finite_pairs, essential_birth


# ------------------------------- the module -------------------------------

class CubicalComplexPallas:
    """Pallas/TPU re-implementation of torch_topological CubicalComplex.forward."""

    def __init__(self, superlevel=False, dim=None):
        self.superlevel = superlevel
        self.dim = dim

    def __call__(self, x):
        x = jnp.asarray(x, dtype=jnp.float32)
        if self.dim is not None:
            shape = x.shape[:-self.dim]
            dims = len(shape)
        else:
            dims = len(x.shape) - 2
        img_shape = x.shape[dims:]
        if len(img_shape) != 2:
            # TODO(synk): only 2-D images supported; gudhi handles arbitrary dims.
            raise NotImplementedError("Only 2-D image data is supported here.")
        if dims == 0:
            return self._forward_stack(x[None])[0]
        elif dims == 1:
            return self._forward_stack(x)
        elif dims == 2:
            b, c = x.shape[0], x.shape[1]
            flat = self._forward_stack(x.reshape((b * c,) + img_shape))
            return [flat[i * c:(i + 1) * c] for i in range(b)]

    def _forward_stack(self, imgs):
        n_img, H, W = imgs.shape
        hw = H * W
        sign = -1.0 if self.superlevel else 1.0

        # --- (1)+(2): filtration sign + per-image argmax, one Pallas pass -------
        flat = imgs.reshape(n_img, hw)                    # free layout change
        n8 = _round_up(n_img, 8)
        block_budget = 4 << 20                            # ~4 MiB input block
        cap_vmem = max(8, block_budget // (hw * 4))
        cap_grid = max(8, n8 // 2)                        # >=2 grid steps (v7x: 2 TCs)
        ti = _pick_tile(min(n8, cap_vmem, cap_grid))
        n_pad = _round_up(n_img, ti)
        if n_pad != n_img:
            flat = jnp.pad(flat, ((0, n_pad - n_img), (0, 0)))   # rows only, cheap
        # TODO(synk): for very large single images (8*H*W*4 >> block budget) the
        # HW axis itself should be chunked with an online argmax accumulator.
        block_bytes = ti * hw * 4
        vmem_limit = int(min(48 << 20, max(16 << 20, 10 * block_bytes)))
        amax_dev = image_argmax(flat, sign=sign, ti=ti, vmem_limit_bytes=vmem_limit)
        argmax_np = np.asarray(amax_dev[:n_img, 0])       # device slice -> tiny D2H

        # --- (3): persistence pairing on host ------------------------------------
        # TODO(synk): gudhi.CubicalComplex pairing (T-construction, dim-1 cycles,
        # boundary-matrix reduction) is sequential/combinatorial with no clean
        # Pallas equivalent; only the 0-dim union-find pairing is computed here.
        # TODO(synk): the host union-find dominates end-to-end time; overlap the
        # D2H transfer / pairing with device work for real workloads.
        imgs_np = np.asarray(imgs)                        # needed on host anyway
        filt_np = -imgs_np if self.superlevel else imgs_np

        # --- (4)+(5): diagram values (host fancy-indexing) + assembly ------------
        out = []
        for i in range(n_img):
            flat_i = filt_np[i].ravel()
            finite, essential_birth = _zero_dim_pairs_numpy(filt_np[i])
            # essential class paired with argmax index (matches torch reference's
            # "fake destroyer" convention, not gudhi's +inf death).
            pairs_i = np.asarray(finite + [(essential_birth, int(argmax_np[i]))],
                                 dtype=np.int64)          # (k, 2)
            creators = np.column_stack(np.unravel_index(pairs_i[:, 0], (H, W)))
            destroyers = np.column_stack(np.unravel_index(pairs_i[:, 1], (H, W)))
            # torch reference uses int64; JAX x64 is disabled by default -> int32.
            gens = jnp.asarray(np.hstack((creators, destroyers)), dtype=jnp.int32)
            diagram0 = jnp.asarray(
                np.stack((flat_i[pairs_i[:, 0]], flat_i[pairs_i[:, 1]]), axis=1),
                dtype=jnp.float32)
            info0 = PersistenceInformation(pairing=gens, diagram=diagram0,
                                           dimension=0)
            # TODO(synk): dim-1 pairing requires boundary-matrix reduction (gudhi
            # internal); emit an empty dim-1 entry to preserve output structure.
            info1 = PersistenceInformation(pairing=jnp.zeros((0, 4), dtype=jnp.int32),
                                           diagram=jnp.zeros((0, 2), dtype=jnp.float32),
                                           dimension=1)
            out.append([info0, info1])
        return out


if __name__ == "__main__":
    key = jax.random.PRNGKey(0)
    x = jax.random.normal(key, (2, 4, 16, 16), dtype=jnp.float32)  # NCHW

    module = CubicalComplexPallas(superlevel=False, dim=None)
    result = module(x)  # list[batch] -> list[channel] -> list[PersistenceInformation]

    # also exercise the superlevel (fused in-kernel negation) path once
    result_sl = CubicalComplexPallas(superlevel=True, dim=None)(x)

    leaves = []
    for res in (result, result_sl):
        for per_batch in res:
            for per_channel in per_batch:
                for info in per_channel:
                    leaves.append(info.diagram)
                    leaves.append(info.pairing)
    jax.block_until_ready(leaves)
    print("KERNEL_OK")
</pallas_src>

<mosaic_0001>
module attributes {stable_mosaic.version = 11 : i64} {
  func.func @_argmax_kernel(%arg0: i32, %arg1: memref<8x256xf32, #tpu.memory_space<vmem>>, %arg2: memref<8x128xi32, #tpu.memory_space<vmem>>) attributes {dimension_semantics = [#tpu.dimension_semantics<parallel>], iteration_bounds = array<i64: 1>, scalar_prefetch = 0 : i64, scratch_operands = 0 : i64, tpu.core_type = #tpu.core_type<tc>, window_params = [{transform_indices = @transform_0, window_bounds = array<i64: 8, 256>}, {transform_indices = @transform_1, window_bounds = array<i64: 8, 128>}]} {
    %c0 = arith.constant 0 : index
    %c0_0 = arith.constant 0 : index
    %0 = vector.load %arg1[%c0, %c0_0] : memref<8x256xf32, #tpu.memory_space<vmem>>, vector<8x256xf32>
    %cst = arith.constant dense<0xFF800000> : vector<8xf32>
    %1 = vector.multi_reduction <maximumf>, %0, %cst [1] : vector<8x256xf32> to vector<8xf32>
    %2 = vector.shape_cast %1 : vector<8xf32> to vector<8x1xf32>
    %3 = tpu.iota {dimensions = array<i32: 1>} : vector<8x256xi32>
    %4 = vector.broadcast %2 : vector<8x1xf32> to vector<8x256xf32>
    %5 = arith.cmpf oeq, %0, %4 : vector<8x256xf32>
    %c256_i32 = arith.constant 256 : i32
    %6 = vector.broadcast %c256_i32 : i32 to vector<8x256xi32>
    %7 = arith.select %5, %3, %6 : vector<8x256xi1>, vector<8x256xi32>
    %cst_1 = arith.constant dense<2147483647> : vector<8xi32>
    %8 = vector.multi_reduction <minsi>, %7, %cst_1 [1] : vector<8x256xi32> to vector<8xi32>
    %9 = vector.shape_cast %8 : vector<8xi32> to vector<8x1xi32>
    %10 = vector.shape_cast %9 : vector<8x1xi32> to vector<8x1xi32>
    %11 = vector.broadcast %10 : vector<8x1xi32> to vector<8x128xi32>
    %c0_2 = arith.constant 0 : index
    %c0_3 = arith.constant 0 : index
    %12 = vector.load %arg2[%c0_2, %c0_3] : memref<8x128xi32, #tpu.memory_space<vmem>>, vector<8x128xi32>
    tpu.vector_store %arg2[%c0_2, %c0_3], %11 {strides = array<i32>} : memref<8x128xi32, #tpu.memory_space<vmem>>, vector<8x128xi32>,
    return
  }
  func.func @transform_0(%arg0: i32) -> (i32, i32) {
    %c0_i32 = arith.constant 0 : i32
    %c0_i32_0 = arith.constant 0 : i32
    return %arg0, %c0_i32 : i32, i32
  }
  func.func @transform_1(%arg0: i32) -> (i32, i32) {
    %c0_i32 = arith.constant 0 : i32
    %c0_i32_0 = arith.constant 0 : i32
    return %arg0, %c0_i32 : i32, i32
  }
}

</mosaic_0001>

<llo_original>
// kernel: tpu_custom_call.1
$region0: #{tpu_custom_call.1}
  #allocation0 [shape = 'u32[]', space=smem, size = 0x4, offset = 0x4, fixed_abs, tag = 'smem constant byte address 0x4 - core index']
  #allocation1 [shape = 'u32[72,128]{1,0:T(1,128)}', space=vmem, size = 0x9000, scoped, tag = 'internal scratch']
  %s0 = inlined_call_operand.hbm [shape: f32[8,256], index: 0, kind: input, shape index: {}]
  %s1 = inlined_call_operand.hbm [shape: s32[8,128], index: 1, kind: output, shape index: {}]
  %s2 = sld [smem:[#allocation0]]
  $region18: #{tpu_custom_call.1} parent=0
    _
  %s4 = ssub.s32 1, %s2
  %s5 = scalar_select 0, %s4, %s2
  $region1: #{tpu_custom_call.1} parent=0
    #allocation2 [shape = 'u8[8192]{0}', space=vmem, size = 0x2000, scoped, tag = 'input window, operand 0, single buffered']
    #allocation3 [shape = 's32[1]{0}', space=sflag, size = 0x4, scoped, tag = 'scoped memory for tpu_custom_call.1']
    #allocation4 [shape = 's32[1]{0}', space=sflag, size = 0x4, scoped, tag = 'scoped memory for tpu_custom_call.1']
    #allocation5 [shape = 'u8[4096]{0}', space=vmem, size = 0x1000, scoped, tag = 'output window, operand 0, single buffered']
    %6 = vsyncpa [#allocation3], 0
    %7 = vsyncpa [#allocation4], 0
    // Predicated region
    $region2: #{tpu_custom_call.1} parent=1 // pred_check
      _
    $region3: #{tpu_custom_call.1} parent=1 // pred_check_branch
      %9 = sbr.rel (0) target = $region5
    $region4: #{tpu_custom_call.1} parent=1 // pred_region
      %11 = vsyncadd [#allocation3], 0
      %s13 = sshll.u32 %s0, 4
      %s14 = int_to_ptr.hbm [resolvable:$true] %s13
      %s15 = sshll.u32 [#allocation2], 4
      %s16 = int_to_ptr.vmem [resolvable:$true] %s15
      %18 = dma.hbm_to_vmem [thread:$0]  %s14, 256, %s16, [#allocation3]
    $region5: #{tpu_custom_call.1} parent=1 // pred_fallthru
      _
    // Predicated region
    $region6: #{tpu_custom_call.1} parent=1 // pred_check
      _
    $region7: #{tpu_custom_call.1} parent=1 // pred_check_branch
      %20 = sbr.rel (0) target = $region9
    $region8: #{tpu_custom_call.1} parent=1 // pred_region
      %22 = dma.done [#allocation3], 256
    $region9: #{tpu_custom_call.1} parent=1 // pred_fallthru
      _
    %v23 = vld [vmem:[#allocation2] sm:$0xff]
    %v24 = vld [vmem:[#allocation2 + $0x8] sm:$0xff]
    %v25 = vmax.f32 %v23, %v24
    %26 = vmax.xlane.f32.xlu0 %v25
    %v27 = vpop.xlane.xlu0 %26
    %v28 = vlaneseq
    %v29 = vand.u32 %v28, 127
    %v30 = vadd.s32 %v29, 128
    %vm31 = vcmp.eq.f32.partialorder %v23, %v27
    %vm32 = vcmp.eq.f32.partialorder %v24, %v27
    %v33 = vsel %vm31, %v29, 256
    %v34 = vsel %vm32, %v30, 256
    %vm35 = vcmp.lt.s32.totalorder %v33, %v34
    %v36 = vsel %vm35, %v33, %v34
    %v37 = vand.u32 %v36, 65535
    %v38 = vshra.s32 %v36, 16
    %v39 = vcvt.s32.f32 %v37
    %v40 = vcvt.s32.f32 %v38
    %41 = vmin.xlane.f32.xlu0 %v40
    %v42 = vpop.xlane.xlu0 %41
    %vm43 = vcmp.eq.f32.partialorder %v40, %v42
    %v44 = vsel %vm43, %v39, inf
    %45 = vmin.xlane.f32.xlu0 %v44
    %v46 = vpop.xlane.xlu0 %45
    %v47 = vcvt.f32.s32 %v46
    %v48 = vcvt.f32.s32 %v42
    %v49 = vshll.u32 %v48, 16
    %v50 = vadd.s32 %v49, %v47
    %51 = vst [vmem:[#allocation5] sm:$0xff] %v50
    // Predicated region
    $region10: #{tpu_custom_call.1} parent=1 // pred_check
      _
    $region11: #{tpu_custom_call.1} parent=1 // pred_check_branch
      %53 = sbr.rel (0) target = $region13
    $region12: #{tpu_custom_call.1} parent=1 // pred_region
      %55 = vsyncadd [#allocation4], 0
      %s57 = sshll.u32 [#allocation5], 4
      %s58 = int_to_ptr.vmem [resolvable:$true] %s57
      %s59 = sshll.u32 %s1, 4
      %s60 = int_to_ptr.hbm [resolvable:$true] %s59
      %62 = dma.vmem_to_hbm [thread:$0]  %s58, 128, %s60, [#allocation4]
    $region13: #{tpu_custom_call.1} parent=1 // pred_fallthru
      _
    // Predicated region
    $region14: #{tpu_custom_call.1} parent=1 // pred_check
      _
    $region15: #{tpu_custom_call.1} parent=1 // pred_check_branch
      %64 = sbr.rel (0) target = $region17
    $region16: #{tpu_custom_call.1} parent=1 // pred_region
      %66 = dma.done [#allocation4], 128
    $region17: #{tpu_custom_call.1} parent=1 // pred_fallthru
      _
    %67 = vsyncpa [#allocation3], 1
    %68 = vsyncpa [#allocation4], 1

</llo_original>
